<compile_context>
chip_gen: v7x
topology: tpu7x:2x2x1
jax: 0.10.0
libtpu: 0.0.40
codegen_flags: <defaults>
</compile_context>

<pallas_src>
import functools

import jax
import jax.numpy as jnp
from jax.experimental import pallas as pl
from jax.experimental.pallas import tpu as pltpu


def _cdiv(a, b):
    return -(-a // b)


def _round_up(a, b):
    return _cdiv(a, b) * b


def _round_down(a, b):
    return (a // b) * b


def _rec_loss_kernel(x_ref, y_ref, w_ref, out_ref, *,
                     bb, tf, rh, cc, n_rc, n_cc, chw, b_total,
                     need_row_mask, need_col_mask):
    """One grid step: accumulate sum_{block} w[row] * (x - y)^2.

    x_ref, y_ref : VMEM (bb, tf) input tiles (any float dtype)
    w_ref        : VMEM (bb, 1)  f32 per-batch weights (0.5 * r^2 / N folded in)
    out_ref      : VMEM (1, rh, cc) f32 partial sums, resident across the
                   feature-tile (reduction) axis.
    """
    i = pl.program_id(0)          # batch-row block (parallel)
    t = pl.program_id(1)          # feature tile    (reduction / arbitrary)

    n_chunks = n_rc * n_cc
    row_base = i * bb
    col_base = t * tf

    def chunk(c, acc):
        # Chunk coordinates (Python ints on the static-unroll path).
        if n_rc == 1:
            rc, ci = 0, c
        elif n_cc == 1:
            rc, ci = c, 0
        else:
            rc, ci = c // n_cc, c % n_cc
        r_start = rc * rh
        c_start = ci * cc
        r_idx = r_start if isinstance(r_start, int) else pl.multiple_of(r_start, rh)
        c_idx = c_start if isinstance(c_start, int) else pl.multiple_of(c_start, cc)

        xv = x_ref[pl.ds(r_idx, rh), pl.ds(c_idx, cc)].astype(jnp.float32)
        yv = y_ref[pl.ds(r_idx, rh), pl.ds(c_idx, cc)].astype(jnp.float32)
        wv = w_ref[pl.ds(r_idx, rh), :]              # (rh, 1) f32 row weights

        d = xv - yv
        contrib = (d * d) * wv                       # scale + r^2 already in wv

        # Mask ragged tails (replaces wrapper-side padding); the select also
        # guards against garbage (possibly NaN) in unwritten VMEM regions.
        if need_col_mask or need_row_mask:
            valid = None
            if need_col_mask:
                lane_i = jax.lax.broadcasted_iota(jnp.int32, (rh, cc), 1)
                valid = (col_base + c_start + lane_i) < chw
            if need_row_mask:
                sub_i = jax.lax.broadcasted_iota(jnp.int32, (rh, cc), 0)
                rmask = (row_base + r_start + sub_i) < b_total
                valid = rmask if valid is None else jnp.logical_and(valid, rmask)
            contrib = jnp.where(valid, contrib, 0.0)

        return acc + contrib

    acc = jnp.zeros((rh, cc), jnp.float32)           # stays in vregs
    if n_chunks <= 16:
        for c in range(n_chunks):                    # static offsets
            acc = chunk(c, acc)
    else:
        acc = jax.lax.fori_loop(0, n_chunks, chunk, acc, unroll=2)

    # Accumulate directly into the resident output block (init at first tile).
    @pl.when(t == 0)
    def _():
        out_ref[0] = jnp.zeros((rh, cc), jnp.float32)

    out_ref[0] += acc


def rec_loss(x, y, reconstructed, *, target_block_bytes=4 * 1024 * 1024,
             chunk_lanes=512):
    """Pallas equivalent of RecLoss.forward(x, y, reconstructed).

    x, y          : (B, C, H, W) float arrays (accumulation done in f32)
    reconstructed : (B, 1, 1, 1) (or (B,)) per-batch weight / flag
    returns       : scalar float32  == 0.5 * mean((x*r - y*r)**2)
    """
    assert x.shape == y.shape, (x.shape, y.shape)
    B = x.shape[0]
    chw = 1
    for d in x.shape[1:]:
        chw *= int(d)
    n_total = B * chw

    # Metadata-only reshapes: no padding, no extra HBM pass over x / y.
    x2 = x.reshape(B, chw)
    y2 = y.reshape(B, chw)

    # Per-batch weight with the loss scale folded in: 0.5 / N * r^2.
    r = jnp.reshape(reconstructed, (B,)).astype(jnp.float32)
    w = ((0.5 / float(n_total)) * r * r).reshape(B, 1)

    itemsize = jnp.dtype(x.dtype).itemsize
    budget = max(1, int(target_block_bytes) // itemsize)   # elems / input / block

    lane = 128
    chunk_lanes = max(lane, (int(chunk_lanes) // lane) * lane)
    cc = min(chunk_lanes, _round_up(chw, lane))             # chunk width (lanes)
    full_w = _round_up(chw, cc)                             # feature extent (mult of cc)

    # Block selection: (bb rows) x (tf lanes), ~target_block_bytes per input.
    if B < 8:
        bb = B                                              # whole (small) batch per block
        tf = min(full_w, max(cc, _round_down(budget // max(B, 1), cc)))
    else:
        rows_budget = budget // (full_w + lane)             # +lane accounts for w tile
        if rows_budget >= 8:                                # full-width multi-batch blocks
            bb = min(_round_down(rows_budget, 8), _round_up(B, 8))
            # Prefer >= 2 row blocks so the leading "parallel" axis can be
            # split across TensorCores (v7x megacore), for any B >= 9.
            bb = min(bb, max(8, _round_up(_cdiv(B, 2), 8)))
            tf = full_w
        else:                                               # huge feature dim: tile features
            bb = 8
            tf = min(full_w, max(cc, _round_down(budget // 8, cc)))
    # Note: for B < 8 with huge C*H*W the grid has a single "parallel" entry,
    # so only one v7x TensorCore is used for that corner case.

    nb = _cdiv(B, bb)
    nt = _cdiv(chw, tf)

    need_row_mask = (nb * bb != B)        # ragged last row block (no padding)
    need_col_mask = (nt * tf != chw)      # ragged last feature tile (no padding)

    rh = bb if bb < 8 else 8              # chunk sublanes
    n_rc = bb // rh
    n_cc = tf // cc

    kernel = functools.partial(
        _rec_loss_kernel,
        bb=bb, tf=tf, rh=rh, cc=cc, n_rc=n_rc, n_cc=n_cc,
        chw=chw, b_total=B,
        need_row_mask=need_row_mask, need_col_mask=need_col_mask)

    cost = pl.CostEstimate(
        flops=4 * n_total,
        transcendentals=0,
        bytes_accessed=2 * n_total * itemsize + B * 4 + nb * rh * cc * 4)

    out = pl.pallas_call(
        kernel,
        out_shape=jax.ShapeDtypeStruct((nb, rh, cc), jnp.float32),
        grid=(nb, nt),
        in_specs=[
            pl.BlockSpec((bb, tf), lambda i, t: (i, t)),    # x tile
            pl.BlockSpec((bb, tf), lambda i, t: (i, t)),    # y tile
            pl.BlockSpec((bb, 1), lambda i, t: (i, 0)),     # per-batch weights
        ],
        out_specs=pl.BlockSpec((1, rh, cc), lambda i, t: (i, 0, 0)),
        compiler_params=pltpu.CompilerParams(
            dimension_semantics=("parallel", "arbitrary"),
            vmem_limit_bytes=32 * 1024 * 1024,
        ),
        cost_estimate=cost,
    )(x2, y2, w)

    # Tiny lane-dense per-row-block partials -> scalar (handled by XLA).
    return jnp.sum(out)


def _reference(x, y, reconstructed):
    rr = jnp.reshape(reconstructed, (x.shape[0],) + (1,) * (x.ndim - 1))
    xf = x.astype(jnp.float32) * rr.astype(jnp.float32)
    yf = y.astype(jnp.float32) * rr.astype(jnp.float32)
    return 0.5 * jnp.mean((xf - yf) ** 2)


if __name__ == "__main__":
    key = jax.random.PRNGKey(0)

    def check(x, y, r, rtol, **kw):
        out = jax.block_until_ready(rec_loss(x, y, r, **kw))
        ref = _reference(x, y, r)
        assert jnp.allclose(out, ref, rtol=rtol, atol=1e-7), (out, ref)

    # 1) Base shape B=2, C=4, 16x16; one r==0 batch. Single full-width block.
    k1, k2, key = jax.random.split(key, 3)
    x = jax.random.normal(k1, (2, 4, 16, 16), dtype=jnp.float32)
    y = jax.random.normal(k2, (2, 4, 16, 16), dtype=jnp.float32)
    r = jnp.array([1.0, 0.0], dtype=jnp.float32).reshape(2, 1, 1, 1)
    check(x, y, r, 1e-4)

    # 2) Ragged feature size (3*7*5 = 105): in-kernel column mask, no padding.
    k1, k2, k3, key = jax.random.split(key, 4)
    x = jax.random.normal(k1, (3, 3, 7, 5), dtype=jnp.float32)
    y = jax.random.normal(k2, (3, 3, 7, 5), dtype=jnp.float32)
    r = jax.random.bernoulli(k3, 0.5, (3, 1, 1, 1)).astype(jnp.float32)
    check(x, y, r, 1e-4)

    # 3) bf16 inputs, non-binary weights (f32 accumulation in-kernel).
    k1, k2, key = jax.random.split(key, 3)
    x = jax.random.normal(k1, (2, 4, 32, 32), dtype=jnp.bfloat16)
    y = jax.random.normal(k2, (2, 4, 32, 32), dtype=jnp.bfloat16)
    r = jnp.array([0.5, 2.0], dtype=jnp.float32).reshape(2, 1, 1, 1)
    check(x, y, r, 2e-3)

    # 4) Multi-batch row blocks, ragged last block (B=12, bb=8) + column mask,
    #    2-entry parallel axis.
    k1, k2, k3, key = jax.random.split(key, 4)
    x = jax.random.normal(k1, (12, 2, 17, 9), dtype=jnp.float32)
    y = jax.random.normal(k2, (12, 2, 17, 9), dtype=jnp.float32)
    r = jax.random.bernoulli(k3, 0.5, (12, 1, 1, 1)).astype(jnp.float32)
    check(x, y, r, 1e-4, target_block_bytes=16 * 1024)

    # 5) fori_loop chunking path (dynamic sublane + lane offsets, both masks).
    k1, k2, k3, key = jax.random.split(key, 4)
    x = jax.random.normal(k1, (24, 3, 40, 40), dtype=jnp.float32)
    y = jax.random.normal(k2, (24, 3, 40, 40), dtype=jnp.float32)
    r = jax.random.bernoulli(k3, 0.5, (24, 1, 1, 1)).astype(jnp.float32)
    check(x, y, r, 1e-4)

    # 6) Feature-tiled reduction (nt > 1): output accumulated across tiles.
    k1, k2, key = jax.random.split(key, 3)
    x = jax.random.normal(k1, (2, 4, 50, 50), dtype=jnp.float32)
    y = jax.random.normal(k2, (2, 4, 50, 50), dtype=jnp.float32)
    r = jnp.array([2.0, 0.5], dtype=jnp.float32).reshape(2, 1, 1, 1)
    check(x, y, r, 1e-4, target_block_bytes=16 * 1024)

    print("KERNEL_OK")
</pallas_src>

<mosaic_0001>
module attributes {stable_mosaic.version = 11 : i64} {
  func.func @_rec_loss_kernel(%arg0: i32, %arg1: i32, %arg2: memref<2x1024xf32, #tpu.memory_space<vmem>>, %arg3: memref<2x1024xf32, #tpu.memory_space<vmem>>, %arg4: memref<2x1xf32, #tpu.memory_space<vmem>>, %arg5: memref<1x2x512xf32, #tpu.memory_space<vmem>>) attributes {dimension_semantics = [#tpu.dimension_semantics<parallel>, #tpu.dimension_semantics<arbitrary>], iteration_bounds = array<i64: 1, 1>, scalar_prefetch = 0 : i64, scratch_operands = 0 : i64, tpu.core_type = #tpu.core_type<tc>, window_params = [{transform_indices = @transform_0, window_bounds = array<i64: 2, 1024>}, {transform_indices = @transform_1, window_bounds = array<i64: 2, 1024>}, {transform_indices = @transform_2, window_bounds = array<i64: 2, 1>}, {transform_indices = @transform_3, window_bounds = array<i64: 1, 2, 512>}]} {
    %cst = arith.constant 0.000000e+00 : f32
    %0 = vector.broadcast %cst : f32 to vector<2x512xf32>
    %c0 = arith.constant 0 : index
    %c0_0 = arith.constant 0 : index
    %1 = vector.load %arg2[%c0, %c0_0] : memref<2x1024xf32, #tpu.memory_space<vmem>>, vector<2x512xf32>
    %c0_1 = arith.constant 0 : index
    %c0_2 = arith.constant 0 : index
    %2 = vector.load %arg3[%c0_1, %c0_2] : memref<2x1024xf32, #tpu.memory_space<vmem>>, vector<2x512xf32>
    %c0_3 = arith.constant 0 : index
    %c0_4 = arith.constant 0 : index
    %3 = vector.load %arg4[%c0_3, %c0_4] : memref<2x1xf32, #tpu.memory_space<vmem>>, vector<2x1xf32>
    %4 = arith.subf %1, %2 : vector<2x512xf32>
    %5 = arith.mulf %4, %4 : vector<2x512xf32>
    %6 = vector.broadcast %3 : vector<2x1xf32> to vector<2x512xf32>
    %7 = arith.mulf %5, %6 : vector<2x512xf32>
    %8 = arith.addf %0, %7 : vector<2x512xf32>
    %c0_5 = arith.constant 0 : index
    %c512 = arith.constant 512 : index
    %9 = vector.load %arg2[%c0_5, %c512] : memref<2x1024xf32, #tpu.memory_space<vmem>>, vector<2x512xf32>
    %c0_6 = arith.constant 0 : index
    %c512_7 = arith.constant 512 : index
    %10 = vector.load %arg3[%c0_6, %c512_7] : memref<2x1024xf32, #tpu.memory_space<vmem>>, vector<2x512xf32>
    %c0_8 = arith.constant 0 : index
    %c0_9 = arith.constant 0 : index
    %11 = vector.load %arg4[%c0_8, %c0_9] : memref<2x1xf32, #tpu.memory_space<vmem>>, vector<2x1xf32>
    %12 = arith.subf %9, %10 : vector<2x512xf32>
    %13 = arith.mulf %12, %12 : vector<2x512xf32>
    %14 = vector.broadcast %11 : vector<2x1xf32> to vector<2x512xf32>
    %15 = arith.mulf %13, %14 : vector<2x512xf32>
    %16 = arith.addf %8, %15 : vector<2x512xf32>
    %c0_i32 = arith.constant 0 : i32
    %17 = arith.cmpi eq, %arg1, %c0_i32 : i32
    %18 = arith.extui %17 : i1 to i32
    %c0_i32_10 = arith.constant 0 : i32
    %19 = arith.cmpi ne, %18, %c0_i32_10 : i32
    scf.if %19 {
      %cst_17 = arith.constant 0.000000e+00 : f32
      %26 = vector.broadcast %cst_17 : f32 to vector<2x512xf32>
      %c0_18 = arith.constant 0 : index
      %c0_19 = arith.constant 0 : index
      %c0_20 = arith.constant 0 : index
      %27 = vector.load %arg5[%c0_18, %c0_19, %c0_20] : memref<1x2x512xf32, #tpu.memory_space<vmem>>, vector<1x2x512xf32>
      %28 = vector.shape_cast %27 : vector<1x2x512xf32> to vector<2x512xf32>
      %29 = vector.shape_cast %26 : vector<2x512xf32> to vector<1x2x512xf32>
      tpu.vector_store %arg5[%c0_18, %c0_19, %c0_20], %29 {strides = array<i32>} : memref<1x2x512xf32, #tpu.memory_space<vmem>>, vector<1x2x512xf32>,
    } else {
    }
    %c0_11 = arith.constant 0 : index
    %c0_12 = arith.constant 0 : index
    %c0_13 = arith.constant 0 : index
    %20 = vector.load %arg5[%c0_11, %c0_12, %c0_13] : memref<1x2x512xf32, #tpu.memory_space<vmem>>, vector<1x2x512xf32>
    %21 = vector.shape_cast %20 : vector<1x2x512xf32> to vector<2x512xf32>
    %22 = arith.addf %21, %16 : vector<2x512xf32>
    %c0_14 = arith.constant 0 : index
    %c0_15 = arith.constant 0 : index
    %c0_16 = arith.constant 0 : index
    %23 = vector.load %arg5[%c0_14, %c0_15, %c0_16] : memref<1x2x512xf32, #tpu.memory_space<vmem>>, vector<1x2x512xf32>
    %24 = vector.shape_cast %23 : vector<1x2x512xf32> to vector<2x512xf32>
    %25 = vector.shape_cast %22 : vector<2x512xf32> to vector<1x2x512xf32>
    tpu.vector_store %arg5[%c0_14, %c0_15, %c0_16], %25 {strides = array<i32>} : memref<1x2x512xf32, #tpu.memory_space<vmem>>, vector<1x2x512xf32>,
    return
  }
  func.func @transform_0(%arg0: i32, %arg1: i32) -> (i32, i32) {
    %c0_i32 = arith.constant 0 : i32
    return %arg0, %arg1 : i32, i32
  }
  func.func @transform_1(%arg0: i32, %arg1: i32) -> (i32, i32) {
    %c0_i32 = arith.constant 0 : i32
    return %arg0, %arg1 : i32, i32
  }
  func.func @transform_2(%arg0: i32, %arg1: i32) -> (i32, i32) {
    %c0_i32 = arith.constant 0 : i32
    %c0_i32_0 = arith.constant 0 : i32
    return %arg0, %c0_i32 : i32, i32
  }
  func.func @transform_3(%arg0: i32, %arg1: i32) -> (i32, i32, i32) {
    %c0_i32 = arith.constant 0 : i32
    %c0_i32_0 = arith.constant 0 : i32
    %c0_i32_1 = arith.constant 0 : i32
    return %arg0, %c0_i32, %c0_i32_0 : i32, i32, i32
  }
}

</mosaic_0001>

<llo_original>
// kernel: tpu_custom_call.1
$region0: #{tpu_custom_call.1}
  #allocation0 [shape = 'u32[]', space=smem, size = 0x4, offset = 0x4, fixed_abs, tag = 'smem constant byte address 0x4 - core index']
  #allocation1 [shape = 'u32[144,128]{1,0:T(1,128)}', space=vmem, size = 0x12000, scoped, tag = 'internal scratch']
  %s0 = inlined_call_operand.hbm [shape: f32[2,1024], index: 0, kind: input, shape index: {}]
  %s1 = inlined_call_operand.hbm [shape: f32[2,1024], index: 1, kind: input, shape index: {}]
  %s2 = inlined_call_operand.vmem [shape: f32[2,1], index: 2, kind: input, shape index: {}]
  %s3 = inlined_call_operand.hbm [shape: f32[1,2,512], index: 3, kind: output, shape index: {}]
  %s4 = sld [smem:[#allocation0]]
  $region34: #{tpu_custom_call.1} parent=0
    _
  %s6 = ssub.s32 1, %s4
  %s7 = scalar_select 0, %s6, %s4
  $region1: #{tpu_custom_call.1} parent=0
    #allocation2 [shape = 'u8[8192]{0}', space=vmem, size = 0x2000, scoped, tag = 'input window, operand 0, single buffered']
    #allocation3 [shape = 's32[1]{0}', space=sflag, size = 0x4, scoped, tag = 'scoped memory for tpu_custom_call.1']
    #allocation4 [shape = 's32[1]{0}', space=sflag, size = 0x4, scoped, tag = 'scoped memory for tpu_custom_call.1']
    #allocation5 [shape = 'u8[8192]{0}', space=vmem, size = 0x2000, scoped, tag = 'input window, operand 1, single buffered']
    #allocation6 [shape = 's32[1]{0}', space=sflag, size = 0x4, scoped, tag = 'scoped memory for tpu_custom_call.1']
    #allocation7 [shape = 'u8[4096]{0}', space=vmem, size = 0x1000, scoped, tag = 'output window, operand 0, single buffered']
    %8 = vsyncpa [#allocation3], 0
    %9 = vsyncpa [#allocation6], 0
    %10 = vsyncpa [#allocation4], 0
    // Predicated region
    $region2: #{tpu_custom_call.1} parent=1 // pred_check
      _
    $region3: #{tpu_custom_call.1} parent=1 // pred_check_branch
      %12 = sbr.rel (0) target = $region5
    $region4: #{tpu_custom_call.1} parent=1 // pred_region
      %s14 = ssub.s32 256, 256
      %15 = vsyncadd [#allocation3], %s14
      %s17 = sshll.u32 [#allocation2], 4
      %s18 = int_to_ptr.vmem [resolvable:$true] %s17
      %20 = dma.hbm_to_vmem [thread:$0]  %s0, 256, %s18, [#allocation3]
    $region5: #{tpu_custom_call.1} parent=1 // pred_fallthru
      _
    // Predicated region
    $region6: #{tpu_custom_call.1} parent=1 // pred_check
      _
    $region7: #{tpu_custom_call.1} parent=1 // pred_check_branch
      %22 = sbr.rel (0) target = $region9
    $region8: #{tpu_custom_call.1} parent=1 // pred_region
      %s24 = ssub.s32 256, 256
      %25 = vsyncadd [#allocation6], %s24
      %s27 = sshll.u32 [#allocation5], 4
      %s28 = int_to_ptr.vmem [resolvable:$true] %s27
      %30 = dma.hbm_to_vmem [thread:$0]  %s1, 256, %s28, [#allocation6]
    $region9: #{tpu_custom_call.1} parent=1 // pred_fallthru
      _
    // Predicated region
    $region10: #{tpu_custom_call.1} parent=1 // pred_check
      _
    $region11: #{tpu_custom_call.1} parent=1 // pred_check_branch
      %32 = sbr.rel (0) target = $region13
    $region12: #{tpu_custom_call.1} parent=1 // pred_region
      _
    $region13: #{tpu_custom_call.1} parent=1 // pred_fallthru
      _
    // Predicated region
    $region14: #{tpu_custom_call.1} parent=1 // pred_check
      _
    $region15: #{tpu_custom_call.1} parent=1 // pred_check_branch
      %34 = sbr.rel (0) target = $region17
    $region16: #{tpu_custom_call.1} parent=1 // pred_region
      %35 = dma.done [#allocation3], 256
    $region17: #{tpu_custom_call.1} parent=1 // pred_fallthru
      _
    // Predicated region
    $region18: #{tpu_custom_call.1} parent=1 // pred_check
      _
    $region19: #{tpu_custom_call.1} parent=1 // pred_check_branch
      %37 = sbr.rel (0) target = $region21
    $region20: #{tpu_custom_call.1} parent=1 // pred_region
      %38 = dma.done [#allocation6], 256
    $region21: #{tpu_custom_call.1} parent=1 // pred_fallthru
      _
    %v39 = vld [vmem:[#allocation2] sm:$0xff]
    %v40 = vld [vmem:[#allocation5] sm:$0xff]
    %v41 = vld [vmem:[%s2] sm:$0x3]
    %v42 = vsub.f32 %v39, %v40
    %v43 = vmul.f32 %v42, %v42
    %45 = vset.pattern.permute.xlu0 0
    %46 = vperm.xlu0 %45, %v41
    %v47 = vpop.permute.xlu0 %46
    %v49 = vunpack.c.l.s4 269488144
    %v50 = vunpack.c.0.s8 %v49
    %v51 = vlaneseq
    %v52 = vshrl.u32 %v51, 7
    %v53 = vsub.s32 %v50, %v52
    %v54 = vrot.slane %v47, %v53
    %v56 = vmul.f32 %v43, %v54
    %v57 = vadd.f32 %v56, 0.0
    %v58 = vld [vmem:[#allocation2 + $0x8] sm:$0xff]
    %v59 = vld [vmem:[#allocation5 + $0x8] sm:$0xff]
    %v60 = vsub.f32 %v58, %v59
    %v61 = vmul.f32 %v60, %v60
    %v62 = vmul.f32 %v61, %v54
    %v63 = vadd.f32 %v57, %v62
    %p64 = scmp.eq.s32.totalorder 0, 0
    // Predicated region
    $region22: #{tpu_custom_call.1} parent=1 // pred_check
      %p65 = pneg %p64
    $region23: #{tpu_custom_call.1} parent=1 // pred_check_branch
      %67 = sbr.rel (%p65) target = $region25
    $region24: #{tpu_custom_call.1} parent=1 // pred_region
      %68 = vst [vmem:[#allocation7] sm:$0xff] 0.0
    $region25: #{tpu_custom_call.1} parent=1 // pred_fallthru
      _
    %v69 = vld [vmem:[#allocation7] sm:$0xff]
    %v70 = vadd.f32 %v69, %v63
    %71 = vst [vmem:[#allocation7] sm:$0xff] %v70
    // Predicated region
    $region26: #{tpu_custom_call.1} parent=1 // pred_check
      _
    $region27: #{tpu_custom_call.1} parent=1 // pred_check_branch
      %73 = sbr.rel (0) target = $region29
    $region28: #{tpu_custom_call.1} parent=1 // pred_region
      %s75 = ssub.s32 128, 128
      %76 = vsyncadd [#allocation4], %s75
      %s78 = sshll.u32 [#allocation7], 4
      %s79 = int_to_ptr.vmem [resolvable:$true] %s78
      %81 = dma.vmem_to_hbm [thread:$0]  %s79, 128, %s3, [#allocation4]
    $region29: #{tpu_custom_call.1} parent=1 // pred_fallthru
      _
    // Predicated region
    $region30: #{tpu_custom_call.1} parent=1 // pred_check
      _
    $region31: #{tpu_custom_call.1} parent=1 // pred_check_branch
      %83 = sbr.rel (0) target = $region33
    $region32: #{tpu_custom_call.1} parent=1 // pred_region
      %84 = dma.done [#allocation4], 128
    $region33: #{tpu_custom_call.1} parent=1 // pred_fallthru
      _
    %85 = vsyncpa [#allocation3], 1
    %86 = vsyncpa [#allocation6], 1
    %87 = vsyncpa [#allocation4], 1

</llo_original>
